<compile_context>
chip_gen: v7x
topology: tpu7x:2x2x1
jax: 0.10.0
libtpu: 0.0.40
codegen_flags: <defaults>
</compile_context>

<pallas_src>
import jax
import jax.numpy as jnp
from jax.experimental import pallas as pl
from jax.experimental.pallas import tpu as pltpu

_CHANNEL_UNROLL_MAX = 16                  # above this, use MXU dot instead of VPU FMAs
_VMEM_BUFFER_TARGET = 16 * 1024 * 1024    # target for the double-buffered x+out working set


def _pad8(v):
    return -(-v // 8) * 8


def _conv1x1_kernel(x_ref, w_ref, o_ref):
    # x_ref: (n_blk, C_in, t_hw)   activation tile, spatial on lanes
    # w_ref: (C_out, C_in)         full (tiny) weight, resident in VMEM
    # o_ref: (n_blk, C_out, t_hw)  output tile, spatial on lanes
    n_blk, c_in, _ = x_ref.shape
    w = w_ref[...]                                        # (C_out, C_in), f32

    if c_in <= _CHANNEL_UNROLL_MAX:
        # Tiny contraction: unrolled VPU broadcast-FMA, hidden under the DMA.
        x = x_ref[...]
        acc = w[None, :, 0:1] * x[:, 0:1, :]              # (n_blk, C_out, t_hw) f32
        for c in range(1, c_in):
            acc = acc + w[None, :, c:c + 1] * x[:, c:c + 1, :]
        o_ref[...] = acc.astype(o_ref.dtype)
    else:
        # Larger contraction: push it onto the otherwise idle MXU, one batch row
        # at a time so the output layout stays (C_out sublanes, t_hw lanes).
        for n in range(n_blk):
            o_ref[n] = jnp.dot(
                w, x_ref[n], preferred_element_type=jnp.float32
            ).astype(o_ref.dtype)


def conv1x1_pallas(x_nchw, weight_oi, *, max_lanes=131072, max_batch_block=None,
                   out_dtype=None):
    """1x1 conv, no bias.  x_nchw: (N, C_in, H, W); weight_oi: (C_out, C_in)."""
    N, C_in, H, W = x_nchw.shape
    C_out, C_in_w = weight_oi.shape
    assert C_in_w == C_in, "weight/input channel mismatch"
    out_dtype = x_nchw.dtype if out_dtype is None else out_dtype

    HW = H * W
    x3 = x_nchw.reshape(N, C_in, HW)                      # free (no data movement)

    x_item = jnp.dtype(x_nchw.dtype).itemsize
    o_item = jnp.dtype(out_dtype).itemsize

    # --- spatial tile --------------------------------------------------------
    if HW <= max_lanes:
        t_hw = HW                                         # full extent (any size)
    else:
        t_hw = (max_lanes // 128) * 128                   # 128-aligned, ragged last tile OK
    n_hw = pl.cdiv(HW, t_hw)

    # --- batch block (fixes the small-HW / large-N regime) -------------------
    # Per-batch-row VMEM cost per buffer (C_in / C_out pad to 8 sublanes).
    bytes_per_batch = (_pad8(C_in) * x_item + _pad8(C_out) * o_item) * t_hw
    n_blk = max(1, _VMEM_BUFFER_TARGET // (2 * bytes_per_batch))
    if C_in > _CHANNEL_UNROLL_MAX:
        n_blk = min(n_blk, 8)                             # MXU path unrolls over n_blk
    if max_batch_block is not None:
        n_blk = min(n_blk, max_batch_block)
    n_blk = int(min(n_blk, N))
    n_nb = pl.cdiv(N, n_blk)

    # --- grid: put the axis with more blocks first (helps the v7x core split) -
    if n_hw >= n_nb:
        grid = (n_hw, n_nb)
        xo_map = lambda j, b: (b, 0, j)
    else:
        grid = (n_nb, n_hw)
        xo_map = lambda b, j: (b, 0, j)
    w_map = lambda *_: (0, 0)

    # --- explicit VMEM budget (v5e scoped default is 16 MiB; v7x physical 64) --
    vmem_needed = 2 * n_blk * bytes_per_batch + (4 << 20)
    vmem_limit = int(min(max(vmem_needed, 32 << 20), 64 << 20))

    out3 = pl.pallas_call(
        _conv1x1_kernel,
        out_shape=jax.ShapeDtypeStruct((N, C_out, HW), out_dtype),
        grid_spec=pltpu.PrefetchScalarGridSpec(
            num_scalar_prefetch=0,
            grid=grid,
            in_specs=[
                # (batch block, full C_in, lane-dense spatial tile)
                pl.BlockSpec((n_blk, C_in, t_hw), xo_map),
                # tiny weight, resident (constant index map)
                pl.BlockSpec((C_out, C_in), w_map),
            ],
            out_specs=pl.BlockSpec((n_blk, C_out, t_hw), xo_map),
        ),
        compiler_params=pltpu.CompilerParams(
            dimension_semantics=("parallel", "parallel"),
            vmem_limit_bytes=vmem_limit),
        cost_estimate=pl.CostEstimate(
            flops=2 * N * HW * C_in * C_out,
            transcendentals=0,
            bytes_accessed=(N * C_in * HW * x_item
                            + N * C_out * HW * o_item
                            + C_in * C_out * jnp.dtype(weight_oi.dtype).itemsize)),
    )(x3, weight_oi)

    return out3.reshape(N, C_out, H, W)                   # free (no data movement)


class LrHSIDictionaryST:
    """JAX mirror of the PyTorch module (1x1 conv, bias=False)."""

    def __init__(self, code_scale, hsi_scale_s, key):
        c_out = code_scale[2]
        c_in = hsi_scale_s
        # PyTorch Conv2d default kaiming_uniform(a=sqrt(5)) => bound = 1/sqrt(fan_in)
        bound = 1.0 / jnp.sqrt(jnp.asarray(c_in, jnp.float32))
        self.weight = jax.random.uniform(
            key, (c_out, c_in), dtype=jnp.float32, minval=-bound, maxval=bound
        )

    def __call__(self, x_nchw):
        return conv1x1_pallas(x_nchw, self.weight)


if __name__ == "__main__":
    key = jax.random.PRNGKey(0)
    k_w, k_x, k_x2, k_x3, k_x4, k_x5, k_w5 = jax.random.split(key, 7)

    code_scale = (0, 0, 8)
    hsi_scale_s = 4
    N, H, W = 2, 16, 16

    module = LrHSIDictionaryST(code_scale, hsi_scale_s, k_w)

    # 1) Primary check (small shapes; exercises the batch-blocked small-HW path).
    x = jax.random.normal(k_x, (N, hsi_scale_s, H, W), dtype=jnp.float32)
    out = jax.block_until_ready(module(x))
    ref = jnp.einsum("nchw,oc->nohw", x, module.weight)
    assert out.shape == (N, code_scale[2], H, W)
    assert jnp.allclose(out, ref, atol=1e-5, rtol=1e-5)

    # 2) Odd spatial size (not a multiple of 128): full-extent lane block.
    x2 = jax.random.normal(k_x2, (1, hsi_scale_s, 10, 13), dtype=jnp.float32)
    out2 = jax.block_until_ready(module(x2))
    ref2 = jnp.einsum("nchw,oc->nohw", x2, module.weight)
    assert out2.shape == (1, code_scale[2], 10, 13)
    assert jnp.allclose(out2, ref2, atol=1e-5, rtol=1e-5)

    # 3) Multi-tile spatial with a ragged last tile (forced via small max_lanes).
    x3 = jax.random.normal(k_x3, (1, hsi_scale_s, 18, 21), dtype=jnp.float32)
    out3 = jax.block_until_ready(conv1x1_pallas(x3, module.weight, max_lanes=256))
    ref3 = jnp.einsum("nchw,oc->nohw", x3, module.weight)
    assert jnp.allclose(out3, ref3, atol=1e-5, rtol=1e-5)

    # 4) Ragged batch blocks (forced small batch block; batch axis leads the grid).
    x4 = jax.random.normal(k_x4, (5, hsi_scale_s, H, W), dtype=jnp.float32)
    out4 = jax.block_until_ready(conv1x1_pallas(x4, module.weight, max_batch_block=2))
    ref4 = jnp.einsum("nchw,oc->nohw", x4, module.weight)
    assert jnp.allclose(out4, ref4, atol=1e-5, rtol=1e-5)

    # 5) Larger channel count -> guarded MXU dot path.
    c_in_big = 32
    w5 = jax.random.normal(k_w5, (code_scale[2], c_in_big), dtype=jnp.float32) * 0.1
    x5 = jax.random.normal(k_x5, (2, c_in_big, H, W), dtype=jnp.float32)
    out5 = jax.block_until_ready(conv1x1_pallas(x5, w5))
    ref5 = jnp.einsum("nchw,oc->nohw", x5, w5)
    assert jnp.allclose(out5, ref5, atol=1e-4, rtol=1e-4)

    print("KERNEL_OK")
</pallas_src>

<mosaic_0001>
module attributes {stable_mosaic.version = 11 : i64} {
  func.func @_conv1x1_kernel(%arg0: i32, %arg1: i32, %arg2: memref<2x4x256xf32, #tpu.memory_space<vmem>>, %arg3: memref<8x4xf32, #tpu.memory_space<vmem>>, %arg4: memref<2x8x256xf32, #tpu.memory_space<vmem>>) attributes {dimension_semantics = [#tpu.dimension_semantics<parallel>, #tpu.dimension_semantics<parallel>], iteration_bounds = array<i64: 1, 1>, scalar_prefetch = 0 : i64, scratch_operands = 0 : i64, tpu.core_type = #tpu.core_type<tc>, window_params = [{transform_indices = @transform_0, window_bounds = array<i64: 2, 4, 256>}, {pipeline_mode = #tpu.pipeline_mode<synchronous>, transform_indices = @transform_1, window_bounds = array<i64: 8, 4>}, {transform_indices = @transform_2, window_bounds = array<i64: 2, 8, 256>}]} {
    %c0 = arith.constant 0 : index
    %c0_0 = arith.constant 0 : index
    %0 = vector.load %arg3[%c0, %c0_0] : memref<8x4xf32, #tpu.memory_space<vmem>>, vector<8x4xf32>
    %c0_1 = arith.constant 0 : index
    %c0_2 = arith.constant 0 : index
    %c0_3 = arith.constant 0 : index
    %1 = vector.load %arg2[%c0_1, %c0_2, %c0_3] : memref<2x4x256xf32, #tpu.memory_space<vmem>>, vector<2x4x256xf32>
    %2 = vector.extract_strided_slice %0 {offsets = [0, 0], sizes = [8, 1], strides = [1, 1]} : vector<8x4xf32> to vector<8x1xf32>
    %3 = vector.shape_cast %2 : vector<8x1xf32> to vector<1x8x1xf32>
    %4 = vector.extract_strided_slice %1 {offsets = [0, 0, 0], sizes = [2, 1, 256], strides = [1, 1, 1]} : vector<2x4x256xf32> to vector<2x1x256xf32>
    %5 = vector.broadcast %3 : vector<1x8x1xf32> to vector<2x8x256xf32>
    %6 = vector.broadcast %4 : vector<2x1x256xf32> to vector<2x8x256xf32>
    %7 = arith.mulf %5, %6 : vector<2x8x256xf32>
    %8 = vector.extract_strided_slice %0 {offsets = [0, 1], sizes = [8, 1], strides = [1, 1]} : vector<8x4xf32> to vector<8x1xf32>
    %9 = vector.shape_cast %8 : vector<8x1xf32> to vector<1x8x1xf32>
    %10 = vector.extract_strided_slice %1 {offsets = [0, 1, 0], sizes = [2, 1, 256], strides = [1, 1, 1]} : vector<2x4x256xf32> to vector<2x1x256xf32>
    %11 = vector.broadcast %9 : vector<1x8x1xf32> to vector<2x8x256xf32>
    %12 = vector.broadcast %10 : vector<2x1x256xf32> to vector<2x8x256xf32>
    %13 = arith.mulf %11, %12 : vector<2x8x256xf32>
    %14 = arith.addf %7, %13 : vector<2x8x256xf32>
    %15 = vector.extract_strided_slice %0 {offsets = [0, 2], sizes = [8, 1], strides = [1, 1]} : vector<8x4xf32> to vector<8x1xf32>
    %16 = vector.shape_cast %15 : vector<8x1xf32> to vector<1x8x1xf32>
    %17 = vector.extract_strided_slice %1 {offsets = [0, 2, 0], sizes = [2, 1, 256], strides = [1, 1, 1]} : vector<2x4x256xf32> to vector<2x1x256xf32>
    %18 = vector.broadcast %16 : vector<1x8x1xf32> to vector<2x8x256xf32>
    %19 = vector.broadcast %17 : vector<2x1x256xf32> to vector<2x8x256xf32>
    %20 = arith.mulf %18, %19 : vector<2x8x256xf32>
    %21 = arith.addf %14, %20 : vector<2x8x256xf32>
    %22 = vector.extract_strided_slice %0 {offsets = [0, 3], sizes = [8, 1], strides = [1, 1]} : vector<8x4xf32> to vector<8x1xf32>
    %23 = vector.shape_cast %22 : vector<8x1xf32> to vector<1x8x1xf32>
    %24 = vector.extract_strided_slice %1 {offsets = [0, 3, 0], sizes = [2, 1, 256], strides = [1, 1, 1]} : vector<2x4x256xf32> to vector<2x1x256xf32>
    %25 = vector.broadcast %23 : vector<1x8x1xf32> to vector<2x8x256xf32>
    %26 = vector.broadcast %24 : vector<2x1x256xf32> to vector<2x8x256xf32>
    %27 = arith.mulf %25, %26 : vector<2x8x256xf32>
    %28 = arith.addf %21, %27 : vector<2x8x256xf32>
    %c0_4 = arith.constant 0 : index
    %c0_5 = arith.constant 0 : index
    %c0_6 = arith.constant 0 : index
    %29 = vector.load %arg4[%c0_4, %c0_5, %c0_6] : memref<2x8x256xf32, #tpu.memory_space<vmem>>, vector<2x8x256xf32>
    tpu.vector_store %arg4[%c0_4, %c0_5, %c0_6], %28 {strides = array<i32>} : memref<2x8x256xf32, #tpu.memory_space<vmem>>, vector<2x8x256xf32>,
    return
  }
  func.func @transform_0(%arg0: i32, %arg1: i32) -> (i32, i32, i32) {
    %c0_i32 = arith.constant 0 : i32
    %c0_i32_0 = arith.constant 0 : i32
    return %arg1, %c0_i32, %arg0 : i32, i32, i32
  }
  func.func @transform_1(%arg0: i32, %arg1: i32) -> (i32, i32) {
    %c0_i32 = arith.constant 0 : i32
    %c0_i32_0 = arith.constant 0 : i32
    %c0_i32_1 = arith.constant 0 : i32
    return %c0_i32, %c0_i32_0 : i32, i32
  }
  func.func @transform_2(%arg0: i32, %arg1: i32) -> (i32, i32, i32) {
    %c0_i32 = arith.constant 0 : i32
    %c0_i32_0 = arith.constant 0 : i32
    return %arg1, %c0_i32, %arg0 : i32, i32, i32
  }
}

</mosaic_0001>

<llo_original>
// kernel: tpu_custom_call.1
$region0: #{tpu_custom_call.1}
  #allocation0 [shape = 'u32[]', space=smem, size = 0x4, offset = 0x4, fixed_abs, tag = 'smem constant byte address 0x4 - core index']
  #allocation1 [shape = 'u32[144,128]{1,0:T(1,128)}', space=vmem, size = 0x12000, scoped, tag = 'internal scratch']
  %s0 = inlined_call_operand.hbm [shape: f32[2,4,256], index: 0, kind: input, shape index: {}]
  %s1 = inlined_call_operand.vmem [shape: f32[8,4], index: 1, kind: input, shape index: {}]
  %s2 = inlined_call_operand.hbm [shape: f32[2,8,256], index: 2, kind: output, shape index: {}]
  %s3 = sld [smem:[#allocation0]]
  $region22: #{tpu_custom_call.1} parent=0
    _
  %s5 = ssub.s32 1, %s3
  %s6 = scalar_select 0, %s5, %s3
  $region1: #{tpu_custom_call.1} parent=0
    #allocation2 [shape = 'u8[8192]{0}', space=vmem, size = 0x2000, scoped, tag = 'input window, operand 0, single buffered']
    #allocation3 [shape = 's32[1]{0}', space=sflag, size = 0x4, scoped, tag = 'scoped memory for tpu_custom_call.1']
    #allocation4 [shape = 's32[1]{0}', space=sflag, size = 0x4, scoped, tag = 'scoped memory for tpu_custom_call.1']
    #allocation5 [shape = 'u8[16384]{0}', space=vmem, size = 0x4000, scoped, tag = 'output window, operand 0, single buffered']
    %7 = vsyncpa [#allocation3], 0
    %8 = vsyncpa [#allocation4], 0
    // Predicated region
    $region2: #{tpu_custom_call.1} parent=1 // pred_check
      _
    $region3: #{tpu_custom_call.1} parent=1 // pred_check_branch
      %10 = sbr.rel (0) target = $region5
    $region4: #{tpu_custom_call.1} parent=1 // pred_region
      %s12 = ssub.s32 256, 256
      %13 = vsyncadd [#allocation3], %s12
      %s14 = sshll.u32 [#allocation2], 4
      %s15 = int_to_ptr.vmem [resolvable:$true] %s14
      %20 = dma.hbm_to_vmem [thread:$0]  %s0, 256, %s15, [#allocation3], 128, 128, 8
    $region5: #{tpu_custom_call.1} parent=1 // pred_fallthru
      _
    // Predicated region
    $region6: #{tpu_custom_call.1} parent=1 // pred_check
      _
    $region7: #{tpu_custom_call.1} parent=1 // pred_check_branch
      %22 = sbr.rel (0) target = $region9
    $region8: #{tpu_custom_call.1} parent=1 // pred_region
      _
    $region9: #{tpu_custom_call.1} parent=1 // pred_fallthru
      _
    // Predicated region
    $region10: #{tpu_custom_call.1} parent=1 // pred_check
      _
    $region11: #{tpu_custom_call.1} parent=1 // pred_check_branch
      %24 = sbr.rel (0) target = $region13
    $region12: #{tpu_custom_call.1} parent=1 // pred_region
      %25 = dma.done [#allocation3], 256
    $region13: #{tpu_custom_call.1} parent=1 // pred_fallthru
      _
    %v26 = vld [vmem:[%s1] sm:$0xff]
    %v27 = vld [vmem:[#allocation2] sm:$0xff]
    %v28 = vld [vmem:[#allocation2 + $0x8] sm:$0xff]
    %30 = vset.pattern.permute.xlu0 0
    %31 = vperm.xlu0 %30, %v26
    %v32 = vpop.permute.xlu0 %31
    %v36 = vlaneseq
    %v37 = vshrl.u32 %v36, 7
    %v38 = vsub.s32 0, %v37
    %v39 = vrot.slane %v27, %v38
    %v40 = vlaneseq
    %v41 = vshrl.u32 %v40, 7
    %v42 = vsub.s32 4, %v41
    %v43 = vrot.slane %v27, %v42
    %v44 = vlaneseq
    %v45 = vshrl.u32 %v44, 7
    %v46 = vsub.s32 0, %v45
    %v47 = vrot.slane %v28, %v46
    %v48 = vlaneseq
    %v49 = vshrl.u32 %v48, 7
    %v50 = vsub.s32 4, %v49
    %v51 = vrot.slane %v28, %v50
    %v56 = vlaneseq
    %v57 = vshrl.u32 %v56, 7
    %v58 = vsub.s32 0, %v57
    %v59 = vrot.slane %v39, %v58
    %v60 = vlaneseq
    %v61 = vshrl.u32 %v60, 7
    %v62 = vsub.s32 0, %v61
    %v63 = vrot.slane %v43, %v62
    %v64 = vlaneseq
    %v65 = vshrl.u32 %v64, 7
    %v66 = vsub.s32 0, %v65
    %v67 = vrot.slane %v47, %v66
    %v68 = vlaneseq
    %v69 = vshrl.u32 %v68, 7
    %v70 = vsub.s32 0, %v69
    %v71 = vrot.slane %v51, %v70
    %v72 = vmul.f32 %v32, %v59
    %v73 = vmul.f32 %v32, %v63
    %v74 = vmul.f32 %v32, %v67
    %v75 = vmul.f32 %v32, %v71
    %76 = vset.pattern.permute.xlu0 1
    %77 = vperm.xlu0 %76, %v26
    %v78 = vpop.permute.xlu0 %77
    %v80 = vlaneseq
    %v81 = vshrl.u32 %v80, 7
    %v82 = vsub.s32 1, %v81
    %v83 = vrot.slane %v27, %v82
    %v84 = vlaneseq
    %v85 = vshrl.u32 %v84, 7
    %v86 = vsub.s32 5, %v85
    %v87 = vrot.slane %v27, %v86
    %v88 = vlaneseq
    %v89 = vshrl.u32 %v88, 7
    %v90 = vsub.s32 1, %v89
    %v91 = vrot.slane %v28, %v90
    %v92 = vlaneseq
    %v93 = vshrl.u32 %v92, 7
    %v94 = vsub.s32 5, %v93
    %v95 = vrot.slane %v28, %v94
    %v100 = vlaneseq
    %v101 = vshrl.u32 %v100, 7
    %v102 = vsub.s32 1, %v101
    %v103 = vrot.slane %v83, %v102
    %v104 = vlaneseq
    %v105 = vshrl.u32 %v104, 7
    %v106 = vsub.s32 1, %v105
    %v107 = vrot.slane %v87, %v106
    %v108 = vlaneseq
    %v109 = vshrl.u32 %v108, 7
    %v110 = vsub.s32 1, %v109
    %v111 = vrot.slane %v91, %v110
    %v112 = vlaneseq
    %v113 = vshrl.u32 %v112, 7
    %v114 = vsub.s32 1, %v113
    %v115 = vrot.slane %v95, %v114
    %v116 = vmul.f32 %v78, %v103
    %v117 = vmul.f32 %v78, %v107
    %v118 = vmul.f32 %v78, %v111
    %v119 = vmul.f32 %v78, %v115
    %v120 = vadd.f32 %v72, %v116
    %v121 = vadd.f32 %v73, %v117
    %v122 = vadd.f32 %v74, %v118
    %v123 = vadd.f32 %v75, %v119
    %124 = vset.pattern.permute.xlu0 2
    %125 = vperm.xlu0 %124, %v26
    %v126 = vpop.permute.xlu0 %125
    %v128 = vlaneseq
    %v129 = vshrl.u32 %v128, 7
    %v130 = vsub.s32 2, %v129
    %v131 = vrot.slane %v27, %v130
    %v132 = vlaneseq
    %v133 = vshrl.u32 %v132, 7
    %v134 = vsub.s32 6, %v133
    %v135 = vrot.slane %v27, %v134
    %v136 = vlaneseq
    %v137 = vshrl.u32 %v136, 7
    %v138 = vsub.s32 2, %v137
    %v139 = vrot.slane %v28, %v138
    %v140 = vlaneseq
    %v141 = vshrl.u32 %v140, 7
    %v142 = vsub.s32 6, %v141
    %v143 = vrot.slane %v28, %v142
    %v148 = vlaneseq
    %v149 = vshrl.u32 %v148, 7
    %v150 = vsub.s32 2, %v149
    %v151 = vrot.slane %v131, %v150
    %v152 = vlaneseq
    %v153 = vshrl.u32 %v152, 7
    %v154 = vsub.s32 2, %v153
    %v155 = vrot.slane %v135, %v154
    %v156 = vlaneseq
    %v157 = vshrl.u32 %v156, 7
    %v158 = vsub.s32 2, %v157
    %v159 = vrot.slane %v139, %v158
    %v160 = vlaneseq
    %v161 = vshrl.u32 %v160, 7
    %v162 = vsub.s32 2, %v161
    %v163 = vrot.slane %v143, %v162
    %v164 = vmul.f32 %v126, %v151
    %v165 = vmul.f32 %v126, %v155
    %v166 = vmul.f32 %v126, %v159
    %v167 = vmul.f32 %v126, %v163
    %v168 = vadd.f32 %v120, %v164
    %v169 = vadd.f32 %v121, %v165
    %v170 = vadd.f32 %v122, %v166
    %v171 = vadd.f32 %v123, %v167
    %172 = vset.pattern.permute.xlu0 3
    %173 = vperm.xlu0 %172, %v26
    %v174 = vpop.permute.xlu0 %173
    %v176 = vlaneseq
    %v177 = vshrl.u32 %v176, 7
    %v178 = vsub.s32 3, %v177
    %v179 = vrot.slane %v27, %v178
    %v180 = vlaneseq
    %v181 = vshrl.u32 %v180, 7
    %v182 = vsub.s32 7, %v181
    %v183 = vrot.slane %v27, %v182
    %v184 = vlaneseq
    %v185 = vshrl.u32 %v184, 7
    %v186 = vsub.s32 3, %v185
    %v187 = vrot.slane %v28, %v186
    %v188 = vlaneseq
    %v189 = vshrl.u32 %v188, 7
    %v190 = vsub.s32 7, %v189
    %v191 = vrot.slane %v28, %v190
    %v196 = vlaneseq
    %v197 = vshrl.u32 %v196, 7
    %v198 = vsub.s32 3, %v197
    %v199 = vrot.slane %v179, %v198
    %v200 = vlaneseq
    %v201 = vshrl.u32 %v200, 7
    %v202 = vsub.s32 3, %v201
    %v203 = vrot.slane %v183, %v202
    %v204 = vlaneseq
    %v205 = vshrl.u32 %v204, 7
    %v206 = vsub.s32 3, %v205
    %v207 = vrot.slane %v187, %v206
    %v208 = vlaneseq
    %v209 = vshrl.u32 %v208, 7
    %v210 = vsub.s32 3, %v209
    %v211 = vrot.slane %v191, %v210
    %v212 = vmul.f32 %v174, %v199
    %v213 = vmul.f32 %v174, %v203
    %v214 = vmul.f32 %v174, %v207
    %v215 = vmul.f32 %v174, %v211
    %v216 = vadd.f32 %v168, %v212
    %v217 = vadd.f32 %v169, %v213
    %v218 = vadd.f32 %v170, %v214
    %v219 = vadd.f32 %v171, %v215
    %220 = vst [vmem:[#allocation5] sm:$0xff] %v216
    %221 = vst [vmem:[#allocation5 + $0x8] sm:$0xff] %v217
    %222 = vst [vmem:[#allocation5 + $0x10] sm:$0xff] %v218
    %223 = vst [vmem:[#allocation5 + $0x18] sm:$0xff] %v219
    // Predicated region
    $region14: #{tpu_custom_call.1} parent=1 // pred_check
      _
    $region15: #{tpu_custom_call.1} parent=1 // pred_check_branch
      %225 = sbr.rel (0) target = $region17
    $region16: #{tpu_custom_call.1} parent=1 // pred_region
      %s227 = ssub.s32 512, 512
      %228 = vsyncadd [#allocation4], %s227
      %s229 = sshll.u32 [#allocation5], 4
      %s230 = int_to_ptr.vmem [resolvable:$true] %s229
      %235 = dma.vmem_to_hbm [thread:$0]  %s230, 512, %s2, [#allocation4], 256, 256, 16
    $region17: #{tpu_custom_call.1} parent=1 // pred_fallthru
      _
    // Predicated region
    $region18: #{tpu_custom_call.1} parent=1 // pred_check
      _
    $region19: #{tpu_custom_call.1} parent=1 // pred_check_branch
      %237 = sbr.rel (0) target = $region21
    $region20: #{tpu_custom_call.1} parent=1 // pred_region
      %238 = dma.done [#allocation4], 512
    $region21: #{tpu_custom_call.1} parent=1 // pred_fallthru
      _
    %239 = vsyncpa [#allocation3], 1
    %240 = vsyncpa [#allocation4], 1

</llo_original>
